<compile_context>
chip_gen: v7x
topology: tpu7x:2x2x1
jax: 0.10.0
libtpu: 0.0.40
codegen_flags: <defaults>
</compile_context>

<pallas_src>
import math

import jax
import jax.numpy as jnp
from jax.experimental import pallas as pl
from jax.experimental.pallas import tpu as pltpu

PI = 3.141592
EPS = 1e-06


def _spherize_kernel(scal_ref, x_ref, o_ref):
    # SMEM scalars (folded on host): [0.5*scaling, alpha, beta, radius] with
    #   alpha = 0.5*(pi/2 - phi_L),  beta = alpha + phi_L
    # so that angularize(scaling*x) = alpha*tanh(0.5*scaling*x) + beta
    # (sigmoid in its single-EUP-op tanh form: sigmoid(z) = 0.5*tanh(z/2)+0.5).
    half_scaling = scal_ref[0]
    alpha = scal_ref[1]
    beta = scal_ref[2]
    radius = scal_ref[3]

    x = x_ref[0].astype(jnp.float32)                     # (C, T) lane-dense
    a = alpha * jnp.tanh(half_scaling * x) + beta        # angularized, in (phi_L, pi/2)

    v_sin = jnp.abs(jnp.sin(a)) + EPS                    # (C, T)
    v_cos = jnp.abs(jnp.cos(a)) + EPS                    # (C, T)

    # Hyperspherical prefix product (see NOTE(structure) above), unrolled:
    # cheap per-sublane VPU multiplies, no cross-lane traffic.
    n_dims = x.shape[0]
    rows = [v_cos[0:1, :]]
    prefix = v_sin[0:1, :]
    for j in range(1, n_dims):
        rows.append(prefix * v_cos[j:j + 1, :])
        prefix = prefix * v_sin[j:j + 1, :]
    rows.append(prefix)

    y = radius * jnp.concatenate(rows, axis=0)           # (C+1, T)
    o_ref[0] = y.astype(o_ref.dtype)


def make_spherization_params(n_dims, delta=1e-06, scaling=1.0, radius=1.0):
    """Deterministic buffer construction mirroring Spherization.__init__.

    The kernel only needs (scaling, radius, phi_L); the generic buffers are
    returned for the pure-JAX reference (which mirrors the PyTorch matmul
    path exactly)."""
    L = 0.01
    upper_bound = PI / 2.0 * (1.0 - L)
    phi_l = math.asin(delta ** (1.0 / n_dims))
    phi_l = phi_l if phi_l < upper_bound else upper_bound

    w_theta = jnp.eye(n_dims, dtype=jnp.float32)
    w_theta = jnp.concatenate([w_theta, w_theta[-1:]], axis=0)      # (n+1, n)
    w_theta_t = w_theta.T                                           # (n, n+1)

    w_phi = jnp.triu(jnp.ones((n_dims + 1, n_dims + 1), jnp.float32), k=1)
    w_phi = w_phi.at[-2, -1].set(0.0)                               # (n+1, n+1)

    b_phi = jnp.zeros((n_dims + 1,), jnp.float32).at[-1].set(-PI / 2.0)
    b_phi = b_phi.reshape(1, -1)                                    # (1, n+1)

    return (float(scaling), float(radius), float(phi_l)), w_theta_t, w_phi, b_phi


def spherization_forward(x_nchw, scaling, radius, phi_l,
                         t_hw=8192, vmem_budget_bytes=8 << 20):
    """x: (N, C, H, W) -> (N, C+1, H, W), channel-first lane-dense kernel."""
    n, c, h, w = x_nchw.shape
    hw = h * w
    x3d = x_nchw.reshape(n, c, hw)                      # free view, no transpose

    # Lane tile: multiple of 128, capped by t_hw, the (128-rounded) HW, and a
    # VMEM budget for the double-buffered f32 in+out blocks.
    bytes_per_lane = (2 * c + 1) * 4 * 2                # (C in + C+1 out) * f32 * 2 bufs
    t_cap = max(128, (vmem_budget_bytes // bytes_per_lane) // 128 * 128)
    t = min(t_hw, t_cap, pl.cdiv(hw, 128) * 128)
    t = max(128, (t // 128) * 128)
    hw_pad = pl.cdiv(hw, t) * t
    if hw_pad != hw:
        x3d = jnp.pad(x3d, ((0, 0), (0, 0), (0, hw_pad - hw)))

    # Fold the scalar algebra once on the host (works even if scaling/radius
    # are traced parameters).
    alpha = 0.5 * (PI / 2.0 - phi_l)
    scalars = jnp.stack([
        jnp.asarray(0.5 * scaling, jnp.float32),
        jnp.asarray(alpha, jnp.float32),
        jnp.asarray(alpha + phi_l, jnp.float32),
        jnp.asarray(radius, jnp.float32),
    ])

    # Advisory cost hint for XLA's scheduler (tanh+sin+cos per input element).
    itemsize = jnp.dtype(x_nchw.dtype).itemsize
    cost = pl.CostEstimate(
        flops=int(n * hw_pad * (5 * c + 1)),
        transcendentals=int(n * hw_pad * 3 * c),
        bytes_accessed=int(n * hw_pad * (2 * c + 1) * itemsize),
    )

    out3d = pl.pallas_call(
        _spherize_kernel,
        out_shape=jax.ShapeDtypeStruct((n, c + 1, hw_pad), x_nchw.dtype),
        grid=(n, hw_pad // t),
        in_specs=[
            pl.BlockSpec(memory_space=pltpu.MemorySpace.SMEM),       # scalars (4,)
            pl.BlockSpec((1, c, t), lambda i, j: (i, 0, j)),         # x block
        ],
        out_specs=pl.BlockSpec((1, c + 1, t), lambda i, j: (i, 0, j)),
        compiler_params=pltpu.CompilerParams(
            dimension_semantics=("parallel", "parallel")),
        cost_estimate=cost,
    )(scalars, x3d)

    out = out3d[:, :, :hw] if hw_pad != hw else out3d
    return out.reshape(n, c + 1, h, w)                  # free view, no transpose


def spherization_ref(x_nchw, scaling, radius, phi_l, wtheta_t, wphi, bphi):
    """Pure-JAX reference mirroring the PyTorch forward exactly (generic path)."""
    n, c, h, w = x_nchw.shape
    x = jnp.transpose(x_nchw, (0, 2, 3, 1)).reshape(-1, c)
    x = scaling * x
    x = (PI / 2.0 - phi_l) * jax.nn.sigmoid(x) + phi_l
    x = jnp.matmul(x, wtheta_t, precision=jax.lax.Precision.HIGHEST)
    v_sin = jnp.sin(x)
    v_cos = jnp.cos(x + bphi)
    x = jnp.matmul(jnp.log(jnp.abs(v_sin) + EPS), wphi,
                   precision=jax.lax.Precision.HIGHEST) \
        + jnp.log(jnp.abs(v_cos) + EPS)
    x = radius * jnp.exp(x)
    x = x.reshape(n, h, w, c + 1)
    return jnp.transpose(x, (0, 3, 1, 2))


if __name__ == "__main__":
    key = jax.random.PRNGKey(0)
    N, C, H, W = 2, 4, 16, 16          # n_dims == C == 4
    x = jax.random.normal(key, (N, C, H, W), dtype=jnp.float32)

    (scaling, radius, phi_l), wtheta_t, wphi, bphi = make_spherization_params(
        n_dims=C, delta=1e-06, scaling=1.25, radius=2.0)

    out = jax.block_until_ready(spherization_forward(x, scaling, radius, phi_l))
    ref = jax.block_until_ready(
        spherization_ref(x, scaling, radius, phi_l, wtheta_t, wphi, bphi))

    assert out.shape == (N, C + 1, H, W), out.shape
    assert jnp.allclose(out, ref, rtol=1e-3, atol=1e-4), (
        float(jnp.max(jnp.abs(out - ref))))

    print("KERNEL_OK")
</pallas_src>

<mosaic_0001>
module attributes {stable_mosaic.version = 11 : i64} {
  func.func @_spherize_kernel(%arg0: i32, %arg1: i32, %arg2: memref<4xf32, #tpu.memory_space<smem>>, %arg3: memref<1x4x256xf32, #tpu.memory_space<vmem>>, %arg4: memref<1x5x256xf32, #tpu.memory_space<vmem>>) attributes {dimension_semantics = [#tpu.dimension_semantics<parallel>, #tpu.dimension_semantics<parallel>], iteration_bounds = array<i64: 2, 1>, scalar_prefetch = 0 : i64, scratch_operands = 0 : i64, tpu.core_type = #tpu.core_type<tc>, window_params = [{transform_indices = @transform_0, window_bounds = array<i64: 4>}, {transform_indices = @transform_1, window_bounds = array<i64: 1, 4, 256>}, {transform_indices = @transform_2, window_bounds = array<i64: 1, 5, 256>}]} {
    %c0 = arith.constant 0 : index
    %0 = memref.load %arg2[%c0] : memref<4xf32, #tpu.memory_space<smem>>
    %c1 = arith.constant 1 : index
    %1 = memref.load %arg2[%c1] : memref<4xf32, #tpu.memory_space<smem>>
    %c2 = arith.constant 2 : index
    %2 = memref.load %arg2[%c2] : memref<4xf32, #tpu.memory_space<smem>>
    %c3 = arith.constant 3 : index
    %3 = memref.load %arg2[%c3] : memref<4xf32, #tpu.memory_space<smem>>
    %c0_0 = arith.constant 0 : index
    %c0_1 = arith.constant 0 : index
    %c0_2 = arith.constant 0 : index
    %4 = vector.load %arg3[%c0_0, %c0_1, %c0_2] : memref<1x4x256xf32, #tpu.memory_space<vmem>>, vector<1x4x256xf32>
    %5 = vector.shape_cast %4 : vector<1x4x256xf32> to vector<4x256xf32>
    %6 = vector.broadcast %0 : f32 to vector<4x256xf32>
    %7 = arith.mulf %6, %5 : vector<4x256xf32>
    %8 = math.tanh %7 : vector<4x256xf32>
    %9 = vector.broadcast %1 : f32 to vector<4x256xf32>
    %10 = arith.mulf %9, %8 : vector<4x256xf32>
    %11 = vector.broadcast %2 : f32 to vector<4x256xf32>
    %12 = arith.addf %10, %11 : vector<4x256xf32>
    %13 = math.sin %12 : vector<4x256xf32>
    %14 = math.absf %13 : vector<4x256xf32>
    %cst = arith.constant 9.99999997E-7 : f32
    %15 = vector.broadcast %cst : f32 to vector<4x256xf32>
    %16 = arith.addf %14, %15 : vector<4x256xf32>
    %17 = math.cos %12 : vector<4x256xf32>
    %18 = math.absf %17 : vector<4x256xf32>
    %cst_3 = arith.constant 9.99999997E-7 : f32
    %19 = vector.broadcast %cst_3 : f32 to vector<4x256xf32>
    %20 = arith.addf %18, %19 : vector<4x256xf32>
    %21 = vector.extract_strided_slice %20 {offsets = [0, 0], sizes = [1, 256], strides = [1, 1]} : vector<4x256xf32> to vector<1x256xf32>
    %22 = vector.extract_strided_slice %16 {offsets = [0, 0], sizes = [1, 256], strides = [1, 1]} : vector<4x256xf32> to vector<1x256xf32>
    %23 = vector.extract_strided_slice %20 {offsets = [1, 0], sizes = [1, 256], strides = [1, 1]} : vector<4x256xf32> to vector<1x256xf32>
    %24 = arith.mulf %22, %23 : vector<1x256xf32>
    %25 = vector.extract_strided_slice %16 {offsets = [1, 0], sizes = [1, 256], strides = [1, 1]} : vector<4x256xf32> to vector<1x256xf32>
    %26 = arith.mulf %22, %25 : vector<1x256xf32>
    %27 = vector.extract_strided_slice %20 {offsets = [2, 0], sizes = [1, 256], strides = [1, 1]} : vector<4x256xf32> to vector<1x256xf32>
    %28 = arith.mulf %26, %27 : vector<1x256xf32>
    %29 = vector.extract_strided_slice %16 {offsets = [2, 0], sizes = [1, 256], strides = [1, 1]} : vector<4x256xf32> to vector<1x256xf32>
    %30 = arith.mulf %26, %29 : vector<1x256xf32>
    %31 = vector.extract_strided_slice %20 {offsets = [3, 0], sizes = [1, 256], strides = [1, 1]} : vector<4x256xf32> to vector<1x256xf32>
    %32 = arith.mulf %30, %31 : vector<1x256xf32>
    %33 = vector.extract_strided_slice %16 {offsets = [3, 0], sizes = [1, 256], strides = [1, 1]} : vector<4x256xf32> to vector<1x256xf32>
    %34 = arith.mulf %30, %33 : vector<1x256xf32>
    %35 = tpu.concatenate %21, %24, %28, %32, %34 in 0 : vector<1x256xf32>, vector<1x256xf32>, vector<1x256xf32>, vector<1x256xf32>, vector<1x256xf32> -> vector<5x256xf32>
    %36 = vector.broadcast %3 : f32 to vector<5x256xf32>
    %37 = arith.mulf %36, %35 : vector<5x256xf32>
    %c0_4 = arith.constant 0 : index
    %c0_5 = arith.constant 0 : index
    %c0_6 = arith.constant 0 : index
    %38 = vector.load %arg4[%c0_4, %c0_5, %c0_6] : memref<1x5x256xf32, #tpu.memory_space<vmem>>, vector<1x5x256xf32>
    %39 = vector.shape_cast %38 : vector<1x5x256xf32> to vector<5x256xf32>
    %40 = vector.shape_cast %37 : vector<5x256xf32> to vector<1x5x256xf32>
    tpu.vector_store %arg4[%c0_4, %c0_5, %c0_6], %40 {strides = array<i32>} : memref<1x5x256xf32, #tpu.memory_space<vmem>>, vector<1x5x256xf32>,
    return
  }
  func.func @transform_0(%arg0: i32, %arg1: i32) -> i32 {
    %c0_i32 = arith.constant 0 : i32
    %c0_i32_0 = arith.constant 0 : i32
    return %c0_i32 : i32
  }
  func.func @transform_1(%arg0: i32, %arg1: i32) -> (i32, i32, i32) {
    %c0_i32 = arith.constant 0 : i32
    %c0_i32_0 = arith.constant 0 : i32
    return %arg0, %c0_i32, %arg1 : i32, i32, i32
  }
  func.func @transform_2(%arg0: i32, %arg1: i32) -> (i32, i32, i32) {
    %c0_i32 = arith.constant 0 : i32
    %c0_i32_0 = arith.constant 0 : i32
    return %arg0, %c0_i32, %arg1 : i32, i32, i32
  }
}

</mosaic_0001>

<llo_original>
// kernel: tpu_custom_call.1
$region0: #{tpu_custom_call.1}
  #allocation0 [shape = 'u32[]', space=smem, size = 0x4, offset = 0x4, fixed_abs, tag = 'smem constant byte address 0x4 - core index']
  #allocation1 [shape = 'u32[144,128]{1,0:T(1,128)}', space=vmem, size = 0x12000, scoped, tag = 'internal scratch']
  %s0 = inlined_call_operand.hbm [shape: f32[4], index: 0, kind: input, shape index: {}]
  %s1 = inlined_call_operand.hbm [shape: f32[2,4,256], index: 1, kind: input, shape index: {}]
  %s2 = inlined_call_operand.vmem [shape: f32[2,5,256], index: 2, kind: output, shape index: {}]
  %s3 = sld [smem:[#allocation0]]
  $region49: #{tpu_custom_call.1} parent=0
    _
  %s5 = ssub.s32 1, %s3
  %s6 = scalar_select 0, %s5, %s3
  $region1: #{tpu_custom_call.1} parent=0
    #allocation2 [shape = 'u8[512]{0}', space=smem, size = 0x200, scoped, tag = 'input window, operand 0, single buffered']
    #allocation3 [shape = 's32[2]{0}', space=sflag, size = 0x8, scoped, tag = 'scoped memory for tpu_custom_call.1']
    #allocation4 [shape = 's32[2]{0}', space=sflag, size = 0x8, scoped, tag = 'scoped memory for tpu_custom_call.1']
    #allocation5 [shape = 'u8[8192]{0}', space=vmem, size = 0x2000, scoped, tag = 'input window, operand 1']
    %7 = vsyncpa [#allocation4], 0
    %8 = vsyncpa [#allocation3], 0
    %s9 = scalar_lea.sflag [#allocation3], 1
    %10 = vsyncpa %s9, 0
    loop: start=0, step=1, limit=4
    $region2: #{tpu_custom_call.1} parent=1 // loop_pre_header
      _
    $region3: #{tpu_custom_call.1} parent=1 // loop_header
      %s12 = sphi 0, %s16
      %p13 = scmp.ge.s32.totalorder %s12, 4
      %s19 = sphi 0, %s31
      %s20 = sphi 0, %s27
      %s21 = sphi 0, %s19
      %s22 = sphi 0, %s20
      %s23 = sphi 0, %s21
      %s24 = sphi 0, %s22
      %s32 = sphi 0, %s32
      %s34 = sphi 0, %s32
      %s35 = sphi 0, %s34
      %s49 = sphi 0, %s35
      %s57 = sphi 0, %s59
      %s60 = sphi 0, %s57
      %s61 = sphi 0, %s60
      %s77 = sphi 0, %s61
      %s85 = sphi 0, %s87
      %s88 = sphi 0, %s85
      %s89 = sphi 0, %s88
      %s105 = sphi 0, %s89
    $region4: #{tpu_custom_call.1} parent=1 // loop_header_branch
      %15 = sbr.rel (%p13) target = $region8
    $region5: #{tpu_custom_call.1} parent=1 // loop_body
      %s17 = ssub.s32 %s12, 1
      %s18 = ssub.s32 %s12, 2
      %s25 = sadd.s32 1, %s20
      %p26 = scmp.ge.s32.totalorder %s25, 1
      %s27 = scalar_select %p26, 0, %s25
      %s28 = sadd.s32 1, %s19
      %s29 = scalar_select %p26, %s28, %s19
      %p30 = scmp.ge.s32.totalorder %s29, 2
      %s31 = scalar_select %p30, 0, %s29
      %s33 = sadd.s32 %s32, 1
      %p36 = scmp.eq.s32.totalorder %s12, 1
      %p37 = scmp.ne.s32.totalorder %s32, %s34
      %p38 = scmp.eq.s32.totalorder %s12, 0
      %p39 = por %p37, %p38
      %p40 = scmp.ne.s32.totalorder %s32, %s34
      %p41 = scmp.eq.s32.totalorder %s17, 1
      %p42 = por %p40, %p41
      %p43 = scmp.ne.s32.totalorder %s34, %s35
      %p44 = scmp.eq.s32.totalorder %s17, 0
      %p45 = por %p43, %p44
      %p46 = scmp.ne.s32.totalorder %s34, %s35
      %p47 = scmp.eq.s32.totalorder %s18, 1
      %p48 = por %p46, %p47
      %p50 = scmp.ne.s32.totalorder %s35, %s49
      %p51 = scmp.eq.s32.totalorder %s18, 0
      %p52 = por %p50, %p51
      %s53 = ssub.s32 %s19, %s31
      %s54 = ssub.s32 %s20, %s27
      %s55 = sor.u32 %s53, %s54
      %p56 = scmp.eq.s32.totalorder %s55, 0
      %s58 = sadd.s32 %s57, 1
      %s59 = scalar_select %p56, %s57, %s58
      %p62 = pneg %p56
      %p63 = scmp.eq.s32.totalorder %s12, 1
      %p64 = por %p62, %p63
      %p65 = scmp.ne.s32.totalorder %s57, %s60
      %p66 = scmp.eq.s32.totalorder %s12, 0
      %p67 = por %p65, %p66
      %p68 = scmp.ne.s32.totalorder %s57, %s60
      %p69 = scmp.eq.s32.totalorder %s17, 1
      %p70 = por %p68, %p69
      %p71 = scmp.ne.s32.totalorder %s60, %s61
      %p72 = scmp.eq.s32.totalorder %s17, 0
      %p73 = por %p71, %p72
      %p74 = scmp.ne.s32.totalorder %s60, %s61
      %p75 = scmp.eq.s32.totalorder %s18, 1
      %p76 = por %p74, %p75
      %p78 = scmp.ne.s32.totalorder %s61, %s77
      %p79 = scmp.eq.s32.totalorder %s18, 0
      %p80 = por %p78, %p79
      %s81 = ssub.s32 %s19, %s31
      %s82 = ssub.s32 %s20, %s27
      %s83 = sor.u32 %s81, %s82
      %p84 = scmp.eq.s32.totalorder %s83, 0
      %s86 = sadd.s32 %s85, 1
      %s87 = scalar_select %p84, %s85, %s86
      %p90 = pneg %p84
      %p91 = scmp.eq.s32.totalorder %s12, 1
      %p92 = por %p90, %p91
      %p93 = scmp.ne.s32.totalorder %s85, %s88
      %p94 = scmp.eq.s32.totalorder %s12, 0
      %p95 = por %p93, %p94
      %p96 = scmp.ne.s32.totalorder %s85, %s88
      %p97 = scmp.eq.s32.totalorder %s17, 1
      %p98 = por %p96, %p97
      %p99 = scmp.ne.s32.totalorder %s88, %s89
      %p100 = scmp.eq.s32.totalorder %s17, 0
      %p101 = por %p99, %p100
      %p102 = scmp.ne.s32.totalorder %s88, %s89
      %p103 = scmp.eq.s32.totalorder %s18, 1
      %p104 = por %p102, %p103
      %p106 = scmp.ne.s32.totalorder %s89, %s105
      %p107 = scmp.eq.s32.totalorder %s18, 0
      %p108 = por %p106, %p107
      %p109 = scmp.le.s32.totalorder 1, %s12
      %p110 = scmp.lt.s32.totalorder %s12, 3
      %p111 = pnand %p109, %p110
      %p112 = pneg %p111
      // Predicated region
      $region9: #{tpu_custom_call.1} parent=5 // pred_check
        _
      $region10: #{tpu_custom_call.1} parent=5 // pred_check_branch
        %114 = sbr.rel (%p111) target = $region12
      $region11: #{tpu_custom_call.1} parent=5 // pred_region
        %s115 = ssub.s32 %s12, 1
        // Predicated region
        $region13: #{tpu_custom_call.1} parent=11 // pred_check
          %p116 = pneg %p45
        $region14: #{tpu_custom_call.1} parent=11 // pred_check_branch
          %118 = sbr.rel (%p116) target = $region16
        $region15: #{tpu_custom_call.1} parent=11 // pred_region
          %s120 = ssub.s32 16, 16
          %121 = vsyncadd [#allocation4], %s120
          %124 = dma.hbm_to_smem %s0, 16, [#allocation2], [#allocation4]
        $region16: #{tpu_custom_call.1} parent=11 // pred_fallthru
          _
      $region12: #{tpu_custom_call.1} parent=5 // pred_fallthru
        _
      %p125 = scmp.lt.s32.totalorder %s12, 2
      // Predicated region
      $region17: #{tpu_custom_call.1} parent=5 // pred_check
        %p126 = pneg %p125
      $region18: #{tpu_custom_call.1} parent=5 // pred_check_branch
        %128 = sbr.rel (%p126) target = $region20
      $region19: #{tpu_custom_call.1} parent=5 // pred_region
        // Predicated region
        $region21: #{tpu_custom_call.1} parent=19 // pred_check
          %p129 = pneg %p67
        $region22: #{tpu_custom_call.1} parent=19 // pred_check_branch
          %131 = sbr.rel (%p129) target = $region24
        $region23: #{tpu_custom_call.1} parent=19 // pred_region
          %s132 = sand.u32 %s57, 1
          %s133 = scalar_lea.sflag [#allocation3], %s132
          %s134 = sand.u32 %s57, 1
          %s135 = smul.addr %s134, 8
          %s136 = scalar_lea.vmem [#allocation5], %s135
          %s137 = smul.u32 2, %s20
          %s139 = ssub.s32 128, 128
          %140 = vsyncadd %s133, %s139
          %s141 = smul.addr %s19, 2
          %s142 = sadd.s32 %s137, %s141
          %s143 = smul.addr %s142, 64
          %s144 = scalar_lea.hbm %s1, %s143
          %s146 = sshll.u32 %s136, 4
          %s147 = int_to_ptr.vmem [resolvable:$true] %s146
          %149 = dma.hbm_to_vmem [thread:$0]  %s144, 128, %s147, %s133
        $region24: #{tpu_custom_call.1} parent=19 // pred_fallthru
          _
      $region20: #{tpu_custom_call.1} parent=5 // pred_fallthru
        _
      %p150 = scmp.le.s32.totalorder 1, %s12
      %p151 = scmp.lt.s32.totalorder %s12, 3
      %p152 = pnand %p150, %p151
      %p153 = pneg %p152
      // Predicated region
      $region25: #{tpu_custom_call.1} parent=5 // pred_check
        _
      $region26: #{tpu_custom_call.1} parent=5 // pred_check_branch
        %155 = sbr.rel (%p152) target = $region28
      $region27: #{tpu_custom_call.1} parent=5 // pred_region
        %s156 = ssub.s32 %s12, 1
        // Predicated region
        $region29: #{tpu_custom_call.1} parent=27 // pred_check
          %p157 = pneg %p45
        $region30: #{tpu_custom_call.1} parent=27 // pred_check_branch
          %159 = sbr.rel (%p157) target = $region32
        $region31: #{tpu_custom_call.1} parent=27 // pred_region
          %160 = dma.done [#allocation4], 16
        $region32: #{tpu_custom_call.1} parent=27 // pred_fallthru
          _
        %s161 = sand.u32 %s60, 1
        %s162 = scalar_lea.sflag [#allocation3], %s161
        %s163 = sand.u32 %s60, 1
        %s164 = smul.addr %s163, 8
        %s165 = scalar_lea.vmem [#allocation5], %s164
        // Predicated region
        $region33: #{tpu_custom_call.1} parent=27 // pred_check
          %p166 = pneg %p73
        $region34: #{tpu_custom_call.1} parent=27 // pred_check_branch
          %168 = sbr.rel (%p166) target = $region36
        $region35: #{tpu_custom_call.1} parent=27 // pred_region
          %169 = dma.done %s162, 128
        $region36: #{tpu_custom_call.1} parent=27 // pred_fallthru
          _
        %170 = sfence
        %p171 = pneg %p45
        %p172 = pneg %p42
        %s173 = sand.u32 %s60, 1
        %s174 = scalar_lea.sflag [#allocation3], %s173
        %s175 = sand.u32 %s60, 1
        %s176 = smul.addr %s175, 8
        %s177 = scalar_lea.vmem [#allocation5], %s176
        %p178 = pneg %p73
        %p179 = pneg %p70
        %p180 = pneg %p101
        %p181 = pneg %p98
        %s182 = smul.u32 2, %s22
        %p183 = scmp.lt.s32.totalorder %s21, 1
        %s184 = scalar_select %p183, %s21, 1
        %p185 = scmp.lt.s32.totalorder %s182, 1
        %s186 = scalar_select %p185, %s182, 1
        %s187 = smul.addr %s184, 2
        %s188 = sadd.s32 %s186, %s187
        %s189 = smul.addr %s188, 8
        %s190 = scalar_lea.vmem %s2, %s189
        %s191 = smul.u32 2, %s22
        %s192 = smul.u32 2, %s22
        %p193 = scmp.lt.s32.totalorder %s21, 1
        %s194 = scalar_select %p193, %s21, 1
        %p195 = scmp.lt.s32.totalorder %s192, 1
        %s196 = scalar_select %p195, %s192, 1
        %s197 = smul.addr %s194, 2
        %s198 = sadd.s32 %s196, %s197
        %s199 = smul.addr %s198, 8
        %s200 = scalar_lea.vmem %s2, %s199
        %s201 = smul.u32 2, %s22
        %s202 = sld [smem:[#allocation2]]
        %s203 = sld [smem:[#allocation2 + $0x1]]
        %s204 = sld [smem:[#allocation2 + $0x2]]
        %s205 = sld [smem:[#allocation2 + $0x3]]
        %v206 = vld [vmem:[%s165] sm:$0xff]
        %v207 = vstv %s202
        %v208 = vmul.f32 %v207, %v206
        %v209 = vtanh.pop %v208
        %v210 = vstv %s203
        %v211 = vmul.f32 %v210, %v209
        %v212 = vstv %s204
        %v213 = vadd.f32 %v211, %v212
        %v214 = vand.u32 2147483647, %v213
        %vm215 = vcmp.le.f32.partialorder %v214, 0.7853982
        %vm216 = vcmp.lt.s32.totalorder %v213, 0
        %v217 = vand.u32 %v213, 2139095040
        %v218 = vshrl.u32 %v217, 23
        %v219 = vsub.s32 %v218, 127
        %v220 = vand.u32 2147483647, %v213
        %v221 = vand.u32 %v220, 8388607
        %v222 = vor.u32 %v221, 8388608
        %v223 = vsub.s32 0, %v222
        %v224 = vadd.s32 %v219, 1
        %vm225 = vcmp.gt.s32.totalorder %v224, 0
        %v226 = vsel %vm225, %v224, 0
        %v227 = vshrl.u32 %v226, 5
        %v228 = vand.u32 %v226, 31
        %v229 = vsub.s32 32, %v228
        %v230 = vshrl.u32 683565275, %v229
        %v231 = vshll.u32 683565275, %v228
        %v232 = vshrl.u32 2475754826, %v229
        %v233 = vor.u32 %v231, %v232
        %v234 = vshll.u32 2475754826, %v228
        %v235 = vshrl.u32 2131351028, %v229
        %v236 = vor.u32 %v234, %v235
        %v237 = vshll.u32 2131351028, %v228
        %v238 = vshrl.u32 2102212464, %v229
        %v239 = vor.u32 %v237, %v238
        %v240 = vshll.u32 2102212464, %v228
        %v241 = vshrl.u32 920167782, %v229
        %v242 = vor.u32 %v240, %v241
        %v243 = vshll.u32 920167782, %v228
        %v244 = vshrl.u32 1326507024, %v229
        %v245 = vor.u32 %v243, %v244
        %vm246 = vcmp.lt.s32.totalorder %v227, 1
        %vm247 = vcmp.lt.s32.totalorder %v227, 2
        %vm248 = vcmp.lt.s32.totalorder %v227, 3
        %vm249 = vcmp.lt.s32.totalorder %v227, 4
        %v250 = vsel %vm246, %v230, %v233
        %v251 = vsel %vm249, %v239, 2102212464
        %v252 = vsel %vm248, %v236, %v251
        %v253 = vsel %vm247, %v250, %v252
        %v254 = vsel %vm246, %v233, %v236
        %v255 = vsel %vm249, %v242, 920167782
        %v256 = vsel %vm248, %v239, %v255
        %v257 = vsel %vm247, %v254, %v256
        %v258 = vsel %vm246, %v236, %v239
        %v259 = vsel %vm249, %v245, 1326507024
        %v260 = vsel %vm248, %v242, %v259
        %v261 = vsel %vm247, %v258, %v260
        %v262 = vshll.u32 %v222, 8
        %v263 = vmul.u32.u64.compose %v262, %v261
        %v264 = vextract.low.u32 %v263
        %v265 = vextract.high.u32 %v263
        %v266 = vmul.u32.u64.compose %v262, %v257
        %v267 = vextract.low.u32 %v266
        %v268 = vextract.high.u32 %v266
        %v269 = vmul.u32 %v262, %v253
        %v270 = vadd.s32 %v265, %v267
        %vm271 = vc.u32 %v265, %v267
        %v272 = vadd.s32 %v268, 1
        %v273 = vsel %vm271, %v272, %v268
        %v274 = vadd.s32 %v269, %v273
        %v275 = vadd.s32 %v274, 536870912
        %v276 = vshrl.u32 %v275, 30
        %v277 = vshll.u32 %v276, 30
        %v278 = vsub.s32 %v274, %v277
        %vm279 = vcmp.lt.s32.totalorder %v278, 0
        %v280 = vsub.s32 0, %v278
        %v281 = vsel %vm279, %v280, %v278
        %v282 = vclz %v281
        %v283 = vsub.s32 %v282, 2
        %vm284 = vcmp.gt.s32.totalorder 0, %v283
        %v285 = vsel %vm284, 0, %v283
        %v286 = vsub.s32 32, %v285
        %v287 = vshll.u32 %v278, %v285
        %v288 = vshrl.u32 %v270, %v286
        %v289 = vor.u32 %v287, %v288
        %v290 = vsub.s32 4294967266, %v285
        %v291 = vadd.s32 %v290, 127
        %v292 = vshll.u32 %v291, 23
        %v293 = vor.u32 4788187, %v292
        %v294 = vand.u32 2147483647, %v293
        %v296 = vcvt.s32.f32 %v289
        %v297 = vmul.f32 %v296, %v294
        %v298 = vxor.u32 %v297, 2147483648
        %v299 = vsel %vm216, %v298, %v297
        %v300 = vsub.s32 4, %v276
        %v301 = vsel %vm216, %v300, %v276
        %v302 = vsel %vm215, %v213, %v299
        %v303 = vsel %vm215, 0, %v301
        %v304 = vcosq.f32.pop %v302
        %v305 = vsinq.f32.pop %v302
        %vm306 = vweird.f32 %v213
        %v307 = vadd.s32 %v303, 3
        %v308 = vand.u32 %v307, 3
        %vm309 = vcmp.lt.s32.totalorder %v308, 2
        %vm310 = vcmp.eq.s32.totalorder %v308, 0
        %v311 = vxor.u32 %v305, 2147483648
        %v312 = vsel %vm310, %v304, %v311
        %vm313 = vcmp.eq.s32.totalorder %v308, 2
        %v314 = vxor.u32 %v304, 2147483648
        %v315 = vsel %vm313, %v314, %v305
        %v316 = vsel %vm309, %v312, %v315
        %v317 = vsel %vm306, nan, %v316
        %v318 = vand.u32 2147483647, %v317
        %v319 = vadd.f32 %v318, 1e-06
        %v320 = vand.u32 2147483647, %v213
        %vm321 = vcmp.le.f32.partialorder %v320, 0.7853982
        %vm322 = vcmp.lt.s32.totalorder %v213, 0
        %v323 = vand.u32 %v213, 2139095040
        %v324 = vshrl.u32 %v323, 23
        %v325 = vsub.s32 %v324, 127
        %v326 = vand.u32 2147483647, %v213
        %v327 = vand.u32 %v326, 8388607
        %v328 = vor.u32 %v327, 8388608
        %v329 = vsub.s32 0, %v328
        %v330 = vadd.s32 %v325, 1
        %vm331 = vcmp.gt.s32.totalorder %v330, 0
        %v332 = vsel %vm331, %v330, 0
        %v333 = vshrl.u32 %v332, 5
        %v334 = vand.u32 %v332, 31
        %v335 = vsub.s32 32, %v334
        %v336 = vshrl.u32 683565275, %v335
        %v337 = vshll.u32 683565275, %v334
        %v338 = vshrl.u32 2475754826, %v335
        %v339 = vor.u32 %v337, %v338
        %v340 = vshll.u32 2475754826, %v334
        %v341 = vshrl.u32 2131351028, %v335
        %v342 = vor.u32 %v340, %v341
        %v343 = vshll.u32 2131351028, %v334
        %v344 = vshrl.u32 2102212464, %v335
        %v345 = vor.u32 %v343, %v344
        %v346 = vshll.u32 2102212464, %v334
        %v347 = vshrl.u32 920167782, %v335
        %v348 = vor.u32 %v346, %v347
        %v349 = vshll.u32 920167782, %v334
        %v350 = vshrl.u32 1326507024, %v335
        %v351 = vor.u32 %v349, %v350
        %vm352 = vcmp.lt.s32.totalorder %v333, 1
        %vm353 = vcmp.lt.s32.totalorder %v333, 2
        %vm354 = vcmp.lt.s32.totalorder %v333, 3
        %vm355 = vcmp.lt.s32.totalorder %v333, 4
        %v356 = vsel %vm352, %v336, %v339
        %v357 = vsel %vm355, %v345, 2102212464
        %v358 = vsel %vm354, %v342, %v357
        %v359 = vsel %vm353, %v356, %v358
        %v360 = vsel %vm352, %v339, %v342
        %v361 = vsel %vm355, %v348, 920167782
        %v362 = vsel %vm354, %v345, %v361
        %v363 = vsel %vm353, %v360, %v362
        %v364 = vsel %vm352, %v342, %v345
        %v365 = vsel %vm355, %v351, 1326507024
        %v366 = vsel %vm354, %v348, %v365
        %v367 = vsel %vm353, %v364, %v366
        %v368 = vshll.u32 %v328, 8
        %v369 = vmul.u32.u64.compose %v368, %v367
        %v370 = vextract.low.u32 %v369
        %v371 = vextract.high.u32 %v369
        %v372 = vmul.u32.u64.compose %v368, %v363
        %v373 = vextract.low.u32 %v372
        %v374 = vextract.high.u32 %v372
        %v375 = vmul.u32 %v368, %v359
        %v376 = vadd.s32 %v371, %v373
        %vm377 = vc.u32 %v371, %v373
        %v378 = vadd.s32 %v374, 1
        %v379 = vsel %vm377, %v378, %v374
        %v380 = vadd.s32 %v375, %v379
        %v381 = vadd.s32 %v380, 536870912
        %v382 = vshrl.u32 %v381, 30
        %v383 = vshll.u32 %v382, 30
        %v384 = vsub.s32 %v380, %v383
        %vm385 = vcmp.lt.s32.totalorder %v384, 0
        %v386 = vsub.s32 0, %v384
        %v387 = vsel %vm385, %v386, %v384
        %v388 = vclz %v387
        %v389 = vsub.s32 %v388, 2
        %vm390 = vcmp.gt.s32.totalorder 0, %v389
        %v391 = vsel %vm390, 0, %v389
        %v392 = vsub.s32 32, %v391
        %v393 = vshll.u32 %v384, %v391
        %v394 = vshrl.u32 %v376, %v392
        %v395 = vor.u32 %v393, %v394
        %v396 = vsub.s32 4294967266, %v391
        %v397 = vadd.s32 %v396, 127
        %v398 = vshll.u32 %v397, 23
        %v399 = vor.u32 4788187, %v398
        %v400 = vand.u32 2147483647, %v399
        %v402 = vcvt.s32.f32 %v395
        %v403 = vmul.f32 %v402, %v400
        %v404 = vxor.u32 %v403, 2147483648
        %v405 = vsel %vm322, %v404, %v403
        %v406 = vsub.s32 4, %v382
        %v407 = vsel %vm322, %v406, %v382
        %v408 = vsel %vm321, %v213, %v405
        %v409 = vsel %vm321, 0, %v407
        %v410 = vcosq.f32.pop %v408
        %v411 = vsinq.f32.pop %v408
        %vm412 = vweird.f32 %v213
        %v413 = vand.u32 %v409, 3
        %vm414 = vcmp.lt.s32.totalorder %v413, 2
        %vm415 = vcmp.eq.s32.totalorder %v413, 0
        %v416 = vxor.u32 %v411, 2147483648
        %v417 = vsel %vm415, %v410, %v416
        %vm418 = vcmp.eq.s32.totalorder %v413, 2
        %v419 = vxor.u32 %v410, 2147483648
        %v420 = vsel %vm418, %v419, %v411
        %v421 = vsel %vm414, %v417, %v420
        %v422 = vsel %vm412, nan, %v421
        %v423 = vand.u32 2147483647, %v422
        %v424 = vadd.f32 %v423, 1e-06
        %v426 = vrot.slane %v424, 5
        %v427 = vrot.slane %v426, 4
        %v429 = vmul.f32 %v319, %v427
        %v431 = vrot.slane %v319, 5
        %v432 = vrot.slane %v431, 4
        %v434 = vmul.f32 %v319, %v432
        %v435 = vrot.slane %v424, 6
        %v436 = vrot.slane %v435, 4
        %v438 = vmul.f32 %v434, %v436
        %v439 = vrot.slane %v319, 6
        %v440 = vrot.slane %v439, 4
        %v442 = vmul.f32 %v434, %v440
        %v443 = vrot.slane %v424, 7
        %v444 = vrot.slane %v443, 4
        %v446 = vmul.f32 %v442, %v444
        %v447 = vrot.slane %v319, 7
        %v448 = vrot.slane %v447, 4
        %v450 = vmul.f32 %v442, %v448
        %v451 = vlaneseq
        %v452 = vshrl.u32 %v451, 7
        %v453 = vsub.s32 0, %v452
        %v454 = vrot.slane %v424, %v453
        %v455 = vlaneseq
        %v456 = vshrl.u32 %v455, 7
        %v457 = vsub.s32 4, %v456
        %v458 = vrot.slane %v424, %v457
        %v462 = vlaneseq
        %v463 = vshrl.u32 %v462, 7
        %v464 = vsub.s32 0, %v463
        %v465 = vrot.slane %v429, %v464
        %v466 = vlaneseq
        %v467 = vshrl.u32 %v466, 7
        %v468 = vsub.s32 4, %v467
        %v469 = vrot.slane %v429, %v468
        %v473 = vlaneseq
        %v474 = vshrl.u32 %v473, 7
        %v475 = vsub.s32 0, %v474
        %v476 = vrot.slane %v438, %v475
        %v477 = vlaneseq
        %v478 = vshrl.u32 %v477, 7
        %v479 = vsub.s32 4, %v478
        %v480 = vrot.slane %v438, %v479
        %v484 = vlaneseq
        %v485 = vshrl.u32 %v484, 7
        %v486 = vsub.s32 0, %v485
        %v487 = vrot.slane %v446, %v486
        %v488 = vlaneseq
        %v489 = vshrl.u32 %v488, 7
        %v490 = vsub.s32 4, %v489
        %v491 = vrot.slane %v446, %v490
        %v495 = vlaneseq
        %v496 = vshrl.u32 %v495, 7
        %v497 = vsub.s32 0, %v496
        %v498 = vrot.slane %v450, %v497
        %v499 = vlaneseq
        %v500 = vshrl.u32 %v499, 7
        %v501 = vsub.s32 4, %v500
        %v502 = vrot.slane %v450, %v501
        %vm505 = vcmask 1040384
        %v506 = vsel %vm505, %v454, %v465
        %v507 = vsel %vm505, %v458, %v469
        %vm508 = vcmask 1041408
        %v509 = vsel %vm508, %v506, %v476
        %v510 = vsel %vm508, %v507, %v480
        %vm511 = vcmask 1042432
        %v512 = vsel %vm511, %v509, %v487
        %v513 = vsel %vm511, %v510, %v491
        %vm514 = vcmask 1043456
        %v515 = vsel %vm514, %v512, %v498
        %v516 = vsel %vm514, %v513, %v502
        %v517 = vstv %s205
        %v518 = vmul.f32 %v517, %v515
        %v519 = vmul.f32 %v517, %v516
        %520 = vst [vmem:[%s200] sm:$0x1f] %v518
        %521 = vst [vmem:[%s200 + $0x8] sm:$0x1f] %v519
        %s522 = smul.u32 2, %s22
        %p523 = scmp.lt.s32.totalorder %s21, 1
        %s524 = scalar_select %p523, %s21, 1
        %p525 = scmp.lt.s32.totalorder %s522, 1
        %s526 = scalar_select %p525, %s522, 1
        %s527 = smul.addr %s524, 2
        %s528 = sadd.s32 %s526, %s527
        %s529 = smul.addr %s528, 8
        %s530 = scalar_lea.vmem %s2, %s529
        // Predicated region
        $region37: #{tpu_custom_call.1} parent=27 // pred_check
          %p531 = pneg %p98
        $region38: #{tpu_custom_call.1} parent=27 // pred_check_branch
          %533 = sbr.rel (%p531) target = $region40
        $region39: #{tpu_custom_call.1} parent=27 // pred_region
          %s534 = smul.u32 2, %s22
        $region40: #{tpu_custom_call.1} parent=27 // pred_fallthru
          _
      $region28: #{tpu_custom_call.1} parent=5 // pred_fallthru
        _
      %p535 = scmp.le.s32.totalorder 2, %s12
      // Predicated region
      $region41: #{tpu_custom_call.1} parent=5 // pred_check
        %p536 = pneg %p535
      $region42: #{tpu_custom_call.1} parent=5 // pred_check_branch
        %538 = sbr.rel (%p536) target = $region44
      $region43: #{tpu_custom_call.1} parent=5 // pred_region
        %s539 = ssub.s32 %s12, 2
        // Predicated region
        $region45: #{tpu_custom_call.1} parent=43 // pred_check
          %p540 = pneg %p104
        $region46: #{tpu_custom_call.1} parent=43 // pred_check_branch
          %542 = sbr.rel (%p540) target = $region48
        $region47: #{tpu_custom_call.1} parent=43 // pred_region
          %s543 = smul.u32 2, %s24
          %p544 = scmp.lt.s32.totalorder %s23, 1
          %s545 = scalar_select %p544, %s23, 1
          %p546 = scmp.lt.s32.totalorder %s543, 1
          %s547 = scalar_select %p546, %s543, 1
          %s548 = smul.addr %s545, 2
          %s549 = sadd.s32 %s547, %s548
          %s550 = smul.addr %s549, 8
          %s551 = scalar_lea.vmem %s2, %s550
        $region48: #{tpu_custom_call.1} parent=43 // pred_fallthru
          _
      $region44: #{tpu_custom_call.1} parent=5 // pred_fallthru
        _
    $region6: #{tpu_custom_call.1} parent=1 // loop_footer
      %s16 = sadd.s32 1, %s12
    $region7: #{tpu_custom_call.1} parent=1 // loop_footer_branch
      %11 = sbr.rel target = $region3
    $region8: #{tpu_custom_call.1} parent=1 // loop_exit
      _
    %552 = vsyncpa [#allocation3], 1
    %s553 = scalar_lea.sflag [#allocation3], 1
    %554 = vsyncpa %s553, 1
    %555 = vsyncpa [#allocation4], 1
    %s556 = scalar_lea.sflag [#allocation4], 1
    %557 = vsyncpa %s556, 1

</llo_original>
